<compile_context>
chip_gen: v5e
topology: v5e:2x2
jax: 0.10.0
libtpu: 0.0.40
codegen_flags: <defaults>
</compile_context>

<pallas_src>
import functools

import jax
import jax.numpy as jnp
from jax.experimental import pallas as pl
from jax.experimental.pallas import tpu as pltpu

LOG_SIG_MIN = -20.0
LOG_SIG_MAX = 2.0
LN_EPS = 1e-5          # PyTorch nn.LayerNorm default eps
OUT_LANES = 8          # output lanes: 0 = mean, 1 = log_std, 2..7 = padding


def _round_up(x, m):
    return (x + m - 1) // m * m


def _layout(S, F):
    """Static row offsets inside the single packed parameter buffer (lanes=F)."""
    off_w1 = 0                               # rows [off_w1, off_w1+S): w1
    off_v1 = _round_up(S, 8)                 # +0/+1/+2: b1, ln1_g, ln1_b
    off_w2 = _round_up(off_v1 + 3, 8)        # rows [off_w2, off_w2+F): w2
    off_v2 = off_w2 + F                      # +0/+1/+2: b2, ln2_g, ln2_b
    off_wh = _round_up(off_v2 + 3, 8)        # rows [off_wh, off_wh+F): head weights
    off_bh = off_wh + F                      # 1 row: head biases
    rows = _round_up(off_bh + 1, 8)
    return off_w1, off_v1, off_w2, off_v2, off_wh, off_bh, rows


def _layernorm_1pass(h, gamma, beta, inv_n):
    # One statistics pass: the two lane reductions are independent and can
    # overlap on the XLU; var = E[h^2] - mu^2 (clamped for fp safety).
    s1 = jnp.sum(h, axis=-1, keepdims=True)
    s2 = jnp.sum(h * h, axis=-1, keepdims=True)
    mu = s1 * inv_n
    var = jnp.maximum(s2 * inv_n - mu * mu, 0.0)
    return (h - mu) * jax.lax.rsqrt(var + LN_EPS) * gamma + beta


def _actor_kernel(x_ref, p_ref, out_ref, *,
                  S, F, off_w1, off_v1, off_w2, off_v2, off_wh, off_bh):
    inv_f = 1.0 / F
    x = x_ref[...]                                     # (TILE_B, S)

    # ---- static-sliced views into the packed parameter buffer ----
    w1 = p_ref[off_w1:off_w1 + S, :]                   # (S, F)
    b1 = p_ref[off_v1 + 0:off_v1 + 1, :]               # (1, F)
    g1 = p_ref[off_v1 + 1:off_v1 + 2, :]
    be1 = p_ref[off_v1 + 2:off_v1 + 3, :]
    w2 = p_ref[off_w2:off_w2 + F, :]                   # (F, F)
    b2 = p_ref[off_v2 + 0:off_v2 + 1, :]
    g2 = p_ref[off_v2 + 1:off_v2 + 2, :]
    be2 = p_ref[off_v2 + 2:off_v2 + 3, :]
    wh = p_ref[off_wh:off_wh + F, :]                   # (F, F): lane0=mean, lane1=log_std
    bh = p_ref[off_bh:off_bh + 1, :]                   # (1, F)

    # ---- base block 1: Linear -> LayerNorm -> ReLU ----
    h = jnp.dot(x, w1, preferred_element_type=jnp.float32) + b1
    h = jnp.maximum(_layernorm_1pass(h, g1, be1, inv_f), 0.0)

    # ---- base block 2: Linear -> LayerNorm -> ReLU ----
    h = jnp.dot(h, w2, preferred_element_type=jnp.float32) + b2
    h = jnp.maximum(_layernorm_1pass(h, g2, be2, inv_f), 0.0)

    # ---- fused heads: one matmul, keep only the first OUT_LANES lanes ----
    z = jnp.dot(h, wh, preferred_element_type=jnp.float32) + bh   # (TILE_B, F)
    z = z[:, :OUT_LANES]                                          # (TILE_B, 8)
    lane = jax.lax.broadcasted_iota(jnp.int32, z.shape, 1)
    out_ref[...] = jnp.where(lane == 0,
                             jnp.tanh(z),
                             jnp.clip(z, LOG_SIG_MIN, LOG_SIG_MAX))


def pack_params(p, state_size, fc_dims):
    """Pack all 12 parameter tensors into one lane-width-F buffer.

    Do this once (outside the hot loop) and reuse the packed buffer.
    """
    S, F = state_size, fc_dims
    off_w1, off_v1, off_w2, off_v2, off_wh, off_bh, rows = _layout(S, F)

    buf = jnp.zeros((rows, F), jnp.float32)
    buf = buf.at[off_w1:off_w1 + S].set(p["w1"])
    buf = buf.at[off_v1 + 0].set(p["b1"][0])
    buf = buf.at[off_v1 + 1].set(p["ln1_g"][0])
    buf = buf.at[off_v1 + 2].set(p["ln1_b"][0])
    buf = buf.at[off_w2:off_w2 + F].set(p["w2"])
    buf = buf.at[off_v2 + 0].set(p["b2"][0])
    buf = buf.at[off_v2 + 1].set(p["ln2_g"][0])
    buf = buf.at[off_v2 + 2].set(p["ln2_b"][0])
    buf = buf.at[off_wh:off_wh + F, 0].set(p["wm"][:, 0])
    buf = buf.at[off_wh:off_wh + F, 1].set(p["ws"][:, 0])
    buf = buf.at[off_bh, 0].set(p["bm"][0, 0])
    buf = buf.at[off_bh, 1].set(p["bs"][0, 0])
    return buf


@functools.partial(jax.jit, static_argnames=("state_size", "fc_dims"))
def actor_forward(state, param_buf, *, state_size, fc_dims):
    """state: (B, state_size) f32.  Returns (mean, log_std), each (B, 1)."""
    B = state.shape[0]
    S, F = state_size, fc_dims
    assert F >= OUT_LANES, "fc_dims must be >= 8"
    off_w1, off_v1, off_w2, off_v2, off_wh, off_bh, rows = _layout(S, F)

    # ---- batch tiling policy ----
    B_pad = _round_up(max(B, 1), 8)
    if B_pad > 128:
        TILE_B = 128                           # bounded pad waste, many parallel steps
        B_pad = _round_up(B_pad, TILE_B)
    elif B_pad >= 64:
        TILE_B = _round_up(B_pad // 2, 8)      # >= 2 steps so v7x megacore can split
        B_pad = _round_up(B_pad, TILE_B)
    else:
        TILE_B = B_pad                         # tiny batch: single step
    if B_pad != B:
        state = jnp.pad(state, ((0, B_pad - B), (0, 0)))

    # VMEM budget: single-buffered params + double-buffered state/out tiles.
    param_bytes = rows * F * 4
    io_bytes = 2 * TILE_B * (S + OUT_LANES) * 4
    vmem_limit = int(min(64 << 20,
                         max(2 * (param_bytes + io_bytes) + (4 << 20), 32 << 20)))

    kernel = functools.partial(
        _actor_kernel, S=S, F=F,
        off_w1=off_w1, off_v1=off_v1, off_w2=off_w2, off_v2=off_v2,
        off_wh=off_wh, off_bh=off_bh)

    out = pl.pallas_call(
        kernel,
        out_shape=jax.ShapeDtypeStruct((B_pad, OUT_LANES), jnp.float32),
        grid_spec=pltpu.PrefetchScalarGridSpec(
            num_scalar_prefetch=0,
            grid=(B_pad // TILE_B,),
            in_specs=[
                pl.BlockSpec((TILE_B, S), lambda i: (i, 0)),       # state tile
                pl.BlockSpec((rows, F), lambda i: (0, 0),          # packed params,
                             pipeline_mode=pl.Buffered(1)),        #   resident, 1-buffered
            ],
            out_specs=pl.BlockSpec((TILE_B, OUT_LANES), lambda i: (i, 0)),
        ),
        compiler_params=pltpu.CompilerParams(
            dimension_semantics=("parallel",),
            vmem_limit_bytes=vmem_limit),
    )(state, param_buf)

    mean = out[:B, 0:1]
    log_std = out[:B, 1:2]
    return mean, log_std


def init_params(key, state_size, fc_dims):
    """Deterministic synthetic init (shapes match the PyTorch module)."""
    ks = jax.random.split(key, 8)

    def lin(kw, kb, fan_in, fan_out):
        bound = 1.0 / jnp.sqrt(jnp.float32(fan_in))
        w = jax.random.uniform(kw, (fan_in, fan_out), jnp.float32, -bound, bound)
        b = jax.random.uniform(kb, (1, fan_out), jnp.float32, -bound, bound)
        return w, b

    w1, b1 = lin(ks[0], ks[1], state_size, fc_dims)
    w2, b2 = lin(ks[2], ks[3], fc_dims, fc_dims)
    wm, bm = lin(ks[4], ks[5], fc_dims, 1)
    ws, bs = lin(ks[6], ks[7], fc_dims, 1)
    return {
        "w1": w1, "b1": b1,
        "ln1_g": jnp.ones((1, fc_dims), jnp.float32),
        "ln1_b": jnp.zeros((1, fc_dims), jnp.float32),
        "w2": w2, "b2": b2,
        "ln2_g": jnp.ones((1, fc_dims), jnp.float32),
        "ln2_b": jnp.zeros((1, fc_dims), jnp.float32),
        "wm": wm, "bm": bm,
        "ws": ws, "bs": bs,
    }


def reference_forward(state, p):
    """Pure-JAX reference (centered LayerNorm, matches PyTorch semantics)."""
    def ln(h, g, b):
        mu = h.mean(-1, keepdims=True)
        var = ((h - mu) ** 2).mean(-1, keepdims=True)
        return (h - mu) * jax.lax.rsqrt(var + LN_EPS) * g + b

    h = jnp.maximum(ln(state @ p["w1"] + p["b1"], p["ln1_g"], p["ln1_b"]), 0.0)
    h = jnp.maximum(ln(h @ p["w2"] + p["b2"], p["ln2_g"], p["ln2_b"]), 0.0)
    mean = jnp.tanh(h @ p["wm"] + p["bm"])
    log_std = jnp.clip(h @ p["ws"] + p["bs"], LOG_SIG_MIN, LOG_SIG_MAX)
    return mean, log_std


if __name__ == "__main__":
    STATE_SIZE, FC_DIMS = 16, 32

    key = jax.random.PRNGKey(0)
    k_s1, k_s2, k_params = jax.random.split(key, 3)
    params = init_params(k_params, STATE_SIZE, FC_DIMS)
    param_buf = pack_params(params, STATE_SIZE, FC_DIMS)

    # B=8: single-step tiny-batch path; B=150: padded multi-step parallel path.
    for B, k in ((8, k_s1), (150, k_s2)):
        state = jax.random.normal(k, (B, STATE_SIZE), jnp.float32)
        mean, log_std = actor_forward(state, param_buf,
                                      state_size=STATE_SIZE, fc_dims=FC_DIMS)
        jax.block_until_ready((mean, log_std))

        ref_mean, ref_log_std = reference_forward(state, params)
        assert mean.shape == (B, 1) and log_std.shape == (B, 1)
        assert jnp.allclose(mean, ref_mean, atol=1e-4, rtol=1e-4)
        assert jnp.allclose(log_std, ref_log_std, atol=1e-4, rtol=1e-4)

    print("KERNEL_OK")
</pallas_src>

<mosaic_0001>
module attributes {stable_mosaic.version = 11 : i64} {
  func.func @_actor_kernel(%arg0: i32, %arg1: memref<8x16xf32, #tpu.memory_space<vmem>>, %arg2: memref<104x32xf32, #tpu.memory_space<vmem>>, %arg3: memref<8x8xf32, #tpu.memory_space<vmem>>) attributes {dimension_semantics = [#tpu.dimension_semantics<parallel>], iteration_bounds = array<i64: 1>, scalar_prefetch = 0 : i64, scratch_operands = 0 : i64, tpu.core_type = #tpu.core_type<tc>, window_params = [{transform_indices = @transform_0, window_bounds = array<i64: 8, 16>}, {pipeline_mode = #tpu.pipeline_mode<synchronous>, transform_indices = @transform_1, window_bounds = array<i64: 104, 32>}, {transform_indices = @transform_2, window_bounds = array<i64: 8, 8>}]} {
    %c0 = arith.constant 0 : index
    %c0_0 = arith.constant 0 : index
    %0 = vector.load %arg1[%c0, %c0_0] : memref<8x16xf32, #tpu.memory_space<vmem>>, vector<8x16xf32>
    %c0_1 = arith.constant 0 : index
    %c0_2 = arith.constant 0 : index
    %1 = vector.load %arg2[%c0_1, %c0_2] : memref<104x32xf32, #tpu.memory_space<vmem>>, vector<16x32xf32>
    %c16 = arith.constant 16 : index
    %c0_3 = arith.constant 0 : index
    %2 = vector.load %arg2[%c16, %c0_3] : memref<104x32xf32, #tpu.memory_space<vmem>>, vector<1x32xf32>
    %c17 = arith.constant 17 : index
    %c0_4 = arith.constant 0 : index
    %3 = vector.load %arg2[%c17, %c0_4] : memref<104x32xf32, #tpu.memory_space<vmem>>, vector<1x32xf32>
    %c18 = arith.constant 18 : index
    %c0_5 = arith.constant 0 : index
    %4 = vector.load %arg2[%c18, %c0_5] : memref<104x32xf32, #tpu.memory_space<vmem>>, vector<1x32xf32>
    %c24 = arith.constant 24 : index
    %c0_6 = arith.constant 0 : index
    %5 = vector.load %arg2[%c24, %c0_6] : memref<104x32xf32, #tpu.memory_space<vmem>>, vector<32x32xf32>
    %c56 = arith.constant 56 : index
    %c0_7 = arith.constant 0 : index
    %6 = vector.load %arg2[%c56, %c0_7] : memref<104x32xf32, #tpu.memory_space<vmem>>, vector<1x32xf32>
    %c57 = arith.constant 57 : index
    %c0_8 = arith.constant 0 : index
    %7 = vector.load %arg2[%c57, %c0_8] : memref<104x32xf32, #tpu.memory_space<vmem>>, vector<1x32xf32>
    %c58 = arith.constant 58 : index
    %c0_9 = arith.constant 0 : index
    %8 = vector.load %arg2[%c58, %c0_9] : memref<104x32xf32, #tpu.memory_space<vmem>>, vector<1x32xf32>
    %c64 = arith.constant 64 : index
    %c0_10 = arith.constant 0 : index
    %9 = vector.load %arg2[%c64, %c0_10] : memref<104x32xf32, #tpu.memory_space<vmem>>, vector<32x32xf32>
    %c96 = arith.constant 96 : index
    %c0_11 = arith.constant 0 : index
    %10 = vector.load %arg2[%c96, %c0_11] : memref<104x32xf32, #tpu.memory_space<vmem>>, vector<1x32xf32>
    %cst = arith.constant dense<0.000000e+00> : vector<8x32xf32>
    %11 = tpu.matmul %0, %1, %cst {dimension_numbers = #tpu.dot_dimension_numbers<[1], [0], [0], [1], [0, 0, 1, 1], [], []>} : vector<8x16xf32>, vector<16x32xf32>, vector<8x32xf32> -> vector<8x32xf32>
    %12 = vector.broadcast %2 : vector<1x32xf32> to vector<8x32xf32>
    %13 = arith.addf %11, %12 : vector<8x32xf32>
    %cst_12 = arith.constant dense<0.000000e+00> : vector<8xf32>
    %14 = vector.multi_reduction <add>, %13, %cst_12 [1] : vector<8x32xf32> to vector<8xf32>
    %15 = vector.shape_cast %14 : vector<8xf32> to vector<8x1xf32>
    %16 = arith.mulf %13, %13 : vector<8x32xf32>
    %cst_13 = arith.constant dense<0.000000e+00> : vector<8xf32>
    %17 = vector.multi_reduction <add>, %16, %cst_13 [1] : vector<8x32xf32> to vector<8xf32>
    %18 = vector.shape_cast %17 : vector<8xf32> to vector<8x1xf32>
    %cst_14 = arith.constant 3.125000e-02 : f32
    %19 = vector.broadcast %cst_14 : f32 to vector<8x1xf32>
    %20 = arith.mulf %15, %19 : vector<8x1xf32>
    %cst_15 = arith.constant 3.125000e-02 : f32
    %21 = vector.broadcast %cst_15 : f32 to vector<8x1xf32>
    %22 = arith.mulf %18, %21 : vector<8x1xf32>
    %23 = arith.mulf %20, %20 : vector<8x1xf32>
    %24 = arith.subf %22, %23 : vector<8x1xf32>
    %cst_16 = arith.constant 0.000000e+00 : f32
    %25 = vector.broadcast %cst_16 : f32 to vector<8x1xf32>
    %26 = arith.maximumf %24, %25 : vector<8x1xf32>
    %27 = vector.broadcast %20 : vector<8x1xf32> to vector<8x32xf32>
    %28 = arith.subf %13, %27 : vector<8x32xf32>
    %cst_17 = arith.constant 9.99999974E-6 : f32
    %29 = vector.broadcast %cst_17 : f32 to vector<8x1xf32>
    %30 = arith.addf %26, %29 : vector<8x1xf32>
    %31 = math.rsqrt %30 : vector<8x1xf32>
    %32 = vector.broadcast %31 : vector<8x1xf32> to vector<8x32xf32>
    %33 = arith.mulf %28, %32 : vector<8x32xf32>
    %34 = vector.broadcast %3 : vector<1x32xf32> to vector<8x32xf32>
    %35 = arith.mulf %33, %34 : vector<8x32xf32>
    %36 = vector.broadcast %4 : vector<1x32xf32> to vector<8x32xf32>
    %37 = arith.addf %35, %36 : vector<8x32xf32>
    %cst_18 = arith.constant 0.000000e+00 : f32
    %38 = vector.broadcast %cst_18 : f32 to vector<8x32xf32>
    %39 = arith.maximumf %37, %38 : vector<8x32xf32>
    %cst_19 = arith.constant dense<0.000000e+00> : vector<8x32xf32>
    %40 = tpu.matmul %39, %5, %cst_19 {dimension_numbers = #tpu.dot_dimension_numbers<[1], [0], [0], [1], [0, 0, 1, 1], [], []>} : vector<8x32xf32>, vector<32x32xf32>, vector<8x32xf32> -> vector<8x32xf32>
    %41 = vector.broadcast %6 : vector<1x32xf32> to vector<8x32xf32>
    %42 = arith.addf %40, %41 : vector<8x32xf32>
    %cst_20 = arith.constant dense<0.000000e+00> : vector<8xf32>
    %43 = vector.multi_reduction <add>, %42, %cst_20 [1] : vector<8x32xf32> to vector<8xf32>
    %44 = vector.shape_cast %43 : vector<8xf32> to vector<8x1xf32>
    %45 = arith.mulf %42, %42 : vector<8x32xf32>
    %cst_21 = arith.constant dense<0.000000e+00> : vector<8xf32>
    %46 = vector.multi_reduction <add>, %45, %cst_21 [1] : vector<8x32xf32> to vector<8xf32>
    %47 = vector.shape_cast %46 : vector<8xf32> to vector<8x1xf32>
    %cst_22 = arith.constant 3.125000e-02 : f32
    %48 = vector.broadcast %cst_22 : f32 to vector<8x1xf32>
    %49 = arith.mulf %44, %48 : vector<8x1xf32>
    %cst_23 = arith.constant 3.125000e-02 : f32
    %50 = vector.broadcast %cst_23 : f32 to vector<8x1xf32>
    %51 = arith.mulf %47, %50 : vector<8x1xf32>
    %52 = arith.mulf %49, %49 : vector<8x1xf32>
    %53 = arith.subf %51, %52 : vector<8x1xf32>
    %cst_24 = arith.constant 0.000000e+00 : f32
    %54 = vector.broadcast %cst_24 : f32 to vector<8x1xf32>
    %55 = arith.maximumf %53, %54 : vector<8x1xf32>
    %56 = vector.broadcast %49 : vector<8x1xf32> to vector<8x32xf32>
    %57 = arith.subf %42, %56 : vector<8x32xf32>
    %cst_25 = arith.constant 9.99999974E-6 : f32
    %58 = vector.broadcast %cst_25 : f32 to vector<8x1xf32>
    %59 = arith.addf %55, %58 : vector<8x1xf32>
    %60 = math.rsqrt %59 : vector<8x1xf32>
    %61 = vector.broadcast %60 : vector<8x1xf32> to vector<8x32xf32>
    %62 = arith.mulf %57, %61 : vector<8x32xf32>
    %63 = vector.broadcast %7 : vector<1x32xf32> to vector<8x32xf32>
    %64 = arith.mulf %62, %63 : vector<8x32xf32>
    %65 = vector.broadcast %8 : vector<1x32xf32> to vector<8x32xf32>
    %66 = arith.addf %64, %65 : vector<8x32xf32>
    %cst_26 = arith.constant 0.000000e+00 : f32
    %67 = vector.broadcast %cst_26 : f32 to vector<8x32xf32>
    %68 = arith.maximumf %66, %67 : vector<8x32xf32>
    %cst_27 = arith.constant dense<0.000000e+00> : vector<8x32xf32>
    %69 = tpu.matmul %68, %9, %cst_27 {dimension_numbers = #tpu.dot_dimension_numbers<[1], [0], [0], [1], [0, 0, 1, 1], [], []>} : vector<8x32xf32>, vector<32x32xf32>, vector<8x32xf32> -> vector<8x32xf32>
    %70 = vector.broadcast %10 : vector<1x32xf32> to vector<8x32xf32>
    %71 = arith.addf %69, %70 : vector<8x32xf32>
    %72 = vector.extract_strided_slice %71 {offsets = [0, 0], sizes = [8, 8], strides = [1, 1]} : vector<8x32xf32> to vector<8x8xf32>
    %73 = tpu.iota {dimensions = array<i32: 1>} : vector<8x8xi32>
    %c0_i32 = arith.constant 0 : i32
    %74 = vector.broadcast %c0_i32 : i32 to vector<8x8xi32>
    %75 = arith.cmpi eq, %73, %74 : vector<8x8xi32>
    %76 = math.tanh %72 : vector<8x8xf32>
    %cst_28 = arith.constant -2.000000e+01 : f32
    %cst_29 = arith.constant 2.000000e+00 : f32
    %77 = vector.broadcast %cst_28 : f32 to vector<8x8xf32>
    %78 = arith.maximumf %77, %72 : vector<8x8xf32>
    %79 = vector.broadcast %cst_29 : f32 to vector<8x8xf32>
    %80 = arith.minimumf %79, %78 : vector<8x8xf32>
    %81 = arith.select %75, %76, %80 : vector<8x8xi1>, vector<8x8xf32>
    %c0_30 = arith.constant 0 : index
    %c0_31 = arith.constant 0 : index
    %82 = vector.load %arg3[%c0_30, %c0_31] : memref<8x8xf32, #tpu.memory_space<vmem>>, vector<8x8xf32>
    tpu.vector_store %arg3[%c0_30, %c0_31], %81 {strides = array<i32>} : memref<8x8xf32, #tpu.memory_space<vmem>>, vector<8x8xf32>,
    return
  }
  func.func @transform_0(%arg0: i32) -> (i32, i32) {
    %c0_i32 = arith.constant 0 : i32
    %c0_i32_0 = arith.constant 0 : i32
    return %arg0, %c0_i32 : i32, i32
  }
  func.func @transform_1(%arg0: i32) -> (i32, i32) {
    %c0_i32 = arith.constant 0 : i32
    %c0_i32_0 = arith.constant 0 : i32
    %c0_i32_1 = arith.constant 0 : i32
    return %c0_i32, %c0_i32_0 : i32, i32
  }
  func.func @transform_2(%arg0: i32) -> (i32, i32) {
    %c0_i32 = arith.constant 0 : i32
    %c0_i32_0 = arith.constant 0 : i32
    return %arg0, %c0_i32 : i32, i32
  }
}

</mosaic_0001>

<llo_original>
// kernel: actor_forward.1
$region0: #{actor_forward.1}
  #allocation0 [shape = 'u32[]', space=smem, size = 0x4, offset = 0x4, fixed_abs, tag = 'smem constant byte address 0x4 - core index']
  #allocation1 [shape = 'u32[72,128]{1,0:T(1,128)}', space=vmem, size = 0x9000, scoped, tag = 'internal scratch']
  %s0 = inlined_call_operand.vmem [shape: f32[8,16], index: 0, kind: input, shape index: {}]
  %s1 = inlined_call_operand.vmem [shape: f32[104,32], index: 1, kind: input, shape index: {}]
  %s2 = inlined_call_operand.vmem [shape: f32[8,8], index: 2, kind: output, shape index: {}]
  %s3 = sld [smem:[#allocation0]]
  $region18: #{actor_forward.1} parent=0
    _
  %s5 = ssub.s32 1, %s3
  %s6 = scalar_select 0, %s5, %s3
  // Predicated region
  $region2: #{actor_forward.1} parent=0 // pred_check
    _
  $region3: #{actor_forward.1} parent=0 // pred_check_branch
    %8 = sbr.rel (0) target = $region5
  $region4: #{actor_forward.1} parent=0 // pred_region
    _
  $region5: #{actor_forward.1} parent=0 // pred_fallthru
    _
  // Predicated region
  $region6: #{actor_forward.1} parent=0 // pred_check
    _
  $region7: #{actor_forward.1} parent=0 // pred_check_branch
    %10 = sbr.rel (0) target = $region9
  $region8: #{actor_forward.1} parent=0 // pred_region
    _
  $region9: #{actor_forward.1} parent=0 // pred_fallthru
    _
  %v11 = vld [vmem:[%s0] sm:$0xff]
  %v12 = vld [vmem:[%s1] sm:$0xff]
  %v13 = vld [vmem:[%s1 + $0x8] sm:$0xff]
  %v14 = vld [vmem:[%s1 + $0x10] sm:$0x1]
  %v15 = vld [vmem:[%s1 + $0x11] sm:$0x1]
  %v16 = vld [vmem:[%s1 + $0x12] sm:$0x1]
  %v17 = vld [vmem:[%s1 + $0x18] sm:$0xff]
  %v18 = vld [vmem:[%s1 + $0x20] sm:$0xff]
  %v19 = vld [vmem:[%s1 + $0x28] sm:$0xff]
  %v20 = vld [vmem:[%s1 + $0x30] sm:$0xff]
  %v21 = vld [vmem:[%s1 + $0x38] sm:$0x1]
  %v22 = vld [vmem:[%s1 + $0x39] sm:$0x1]
  %v23 = vld [vmem:[%s1 + $0x3a] sm:$0x1]
  %v24 = vld [vmem:[%s1 + $0x40] sm:$0xff]
  %v25 = vld [vmem:[%s1 + $0x48] sm:$0xff]
  %v26 = vld [vmem:[%s1 + $0x50] sm:$0xff]
  %v27 = vld [vmem:[%s1 + $0x58] sm:$0xff]
  %v28 = vld [vmem:[%s1 + $0x60] sm:$0x1]
  %v29 = vperm.slane %v14, 0
  %vm30 = vcmask 130048
  %v32 = vsel %vm30, %v11, 0
  %34 = vmatpush.msra.mxu0 0.0
  %35 = vmatpush.msra.mxu0 0.0
  %36 = vmatpush.msra.mxu0 0.0
  %37 = vmatpush.msra.mxu0 0.0
  %38 = vmatpush.msra.mxu0 0.0
  %39 = vmatpush.msra.mxu0 0.0
  %40 = vmatpush.msra.mxu0 0.0
  %41 = vmatpush.msra.mxu0 0.0
  %42 = vmatpush.msra.mxu0 0.0
  %43 = vmatpush.msra.mxu0 0.0
  %44 = vmatpush.msra.mxu0 0.0
  %45 = vmatpush.msra.mxu0 0.0
  %46 = vmatpush.msra.mxu0 0.0
  %47 = vmatpush.msra.mxu0 0.0
  %48 = vmatpush.msra.mxu0 %v13
  %49 = vmatpush.msra.mxu0 %v12
  %50 = vmatmul.f32.gmra.mxu0 %v32
  %v51 = vpop.f32.mrf.mxu0
  %v52 = vadd.f32 %v29, %v51
  %53 = vdwg.mxu0
  %vm54 = vcmask 261120
  %v55 = vsel %vm54, %v52, 0.0
  %56 = vadd.xlane.f32.xlu0 %v55
  %v57 = vpop.xlane.xlu0 %56
  %v58 = vmul.f32 %v52, %v52
  %v59 = vsel %vm54, %v58, 0.0
  %60 = vadd.xlane.f32.xlu0 %v59
  %v61 = vpop.xlane.xlu0 %60
  %v62 = vmul.f32 %v57, 0.03125
  %v63 = vmul.f32 %v61, 0.03125
  %v64 = vmul.f32 %v62, %v62
  %v65 = vsub.f32 %v63, %v64
  %v66 = vmax.f32 %v65, 0.0
  %v67 = vsub.f32 %v52, %v62
  %v68 = vadd.f32 %v66, 1e-05
  %v69 = vrsqrt.pop %v68
  %v70 = vmul.f32 %v69, %v68
  %v71 = vmul.f32 %v70, %v69
  %v72 = vmul.f32 0.5, %v71
  %v73 = vsub.f32 1.5, %v72
  %v74 = vmul.f32 %v69, %v73
  %vm75 = vweird.f32 %v68
  %vm76 = vweird.f32 %v69
  %vm77 = vmor %vm75, %vm76
  %v78 = vsel %vm77, %v69, %v74
  %v79 = vmul.f32 %v67, %v78
  %v80 = vperm.slane %v15, 0
  %v81 = vmul.f32 %v79, %v80
  %v82 = vperm.slane %v16, 0
  %v83 = vadd.f32 %v81, %v82
  %v84 = vmax.f32 %v83, 0.0
  %v85 = vperm.slane %v21, 0
  %v87 = vsel %vm54, %v84, 0
  %89 = vmatpush.msra.mxu0 0.0
  %90 = vmatpush.msra.mxu0 0.0
  %91 = vmatpush.msra.mxu0 0.0
  %92 = vmatpush.msra.mxu0 0.0
  %93 = vmatpush.msra.mxu0 0.0
  %94 = vmatpush.msra.mxu0 0.0
  %95 = vmatpush.msra.mxu0 0.0
  %96 = vmatpush.msra.mxu0 0.0
  %97 = vmatpush.msra.mxu0 0.0
  %98 = vmatpush.msra.mxu0 0.0
  %99 = vmatpush.msra.mxu0 0.0
  %100 = vmatpush.msra.mxu0 0.0
  %101 = vmatpush.msra.mxu0 %v20
  %102 = vmatpush.msra.mxu0 %v19
  %103 = vmatpush.msra.mxu0 %v18
  %104 = vmatpush.msra.mxu0 %v17
  %105 = vmatmul.f32.gmra.mxu0 %v87
  %v106 = vpop.f32.mrf.mxu0
  %v107 = vadd.f32 %v85, %v106
  %108 = vdwg.mxu0
  %v109 = vsel %vm54, %v107, 0.0
  %110 = vadd.xlane.f32.xlu0 %v109
  %v111 = vpop.xlane.xlu0 %110
  %v112 = vmul.f32 %v107, %v107
  %v113 = vsel %vm54, %v112, 0.0
  %114 = vadd.xlane.f32.xlu0 %v113
  %v115 = vpop.xlane.xlu0 %114
  %v116 = vmul.f32 %v111, 0.03125
  %v117 = vmul.f32 %v115, 0.03125
  %v118 = vmul.f32 %v116, %v116
  %v119 = vsub.f32 %v117, %v118
  %v120 = vmax.f32 %v119, 0.0
  %v121 = vsub.f32 %v107, %v116
  %v122 = vadd.f32 %v120, 1e-05
  %v123 = vrsqrt.pop %v122
  %v124 = vmul.f32 %v123, %v122
  %v125 = vmul.f32 %v124, %v123
  %v126 = vmul.f32 0.5, %v125
  %v127 = vsub.f32 1.5, %v126
  %v128 = vmul.f32 %v123, %v127
  %vm129 = vweird.f32 %v122
  %vm130 = vweird.f32 %v123
  %vm131 = vmor %vm129, %vm130
  %v132 = vsel %vm131, %v123, %v128
  %v133 = vmul.f32 %v121, %v132
  %v134 = vperm.slane %v22, 0
  %v135 = vmul.f32 %v133, %v134
  %v136 = vperm.slane %v23, 0
  %v137 = vadd.f32 %v135, %v136
  %v138 = vmax.f32 %v137, 0.0
  %v139 = vperm.slane %v28, 0
  %v141 = vsel %vm54, %v138, 0
  %143 = vmatpush.msra.mxu0 0.0
  %144 = vmatpush.msra.mxu0 0.0
  %145 = vmatpush.msra.mxu0 0.0
  %146 = vmatpush.msra.mxu0 0.0
  %147 = vmatpush.msra.mxu0 0.0
  %148 = vmatpush.msra.mxu0 0.0
  %149 = vmatpush.msra.mxu0 0.0
  %150 = vmatpush.msra.mxu0 0.0
  %151 = vmatpush.msra.mxu0 0.0
  %152 = vmatpush.msra.mxu0 0.0
  %153 = vmatpush.msra.mxu0 0.0
  %154 = vmatpush.msra.mxu0 0.0
  %155 = vmatpush.msra.mxu0 %v27
  %156 = vmatpush.msra.mxu0 %v26
  %157 = vmatpush.msra.mxu0 %v25
  %158 = vmatpush.msra.mxu0 %v24
  %159 = vmatmul.f32.gmra.mxu0 %v141
  %v160 = vpop.f32.mrf.mxu0
  %v161 = vadd.f32 %v139, %v160
  %162 = vdwg.mxu0
  %v163 = vlaneseq
  %v164 = vand.u32 %v163, 127
  %vm165 = vcmp.eq.s32.totalorder %v164, 0
  %v166 = vtanh.pop %v161
  %v167 = vmax.f32 %v161, -20.0
  %v168 = vmin.f32 %v167, 2.0
  %v169 = vsel %vm165, %v166, %v168
  %vm170 = vcmask 64512
  %171 = vst.msk [vmem:[%s2] sm:$0xff] %vm170, %v169
  // Predicated region
  $region10: #{actor_forward.1} parent=0 // pred_check
    _
  $region11: #{actor_forward.1} parent=0 // pred_check_branch
    %173 = sbr.rel (0) target = $region13
  $region12: #{actor_forward.1} parent=0 // pred_region
    _
  $region13: #{actor_forward.1} parent=0 // pred_fallthru
    _
  // Predicated region
  $region14: #{actor_forward.1} parent=0 // pred_check
    _
  $region15: #{actor_forward.1} parent=0 // pred_check_branch
    %175 = sbr.rel (0) target = $region17
  $region16: #{actor_forward.1} parent=0 // pred_region
    _
  $region17: #{actor_forward.1} parent=0 // pred_fallthru
    _

</llo_original>
